<compile_context>
chip_gen: v7x
topology: tpu7x:2x2x1
jax: 0.10.0
libtpu: 0.0.40
codegen_flags: <defaults>
</compile_context>

<pallas_src>
import jax
import jax.numpy as jnp
from jax.experimental import pallas as pl
from jax.experimental.pallas import tpu as pltpu

LN_EPS = 1e-5  # PyTorch nn.LayerNorm default


def _round_up(n, m):
    return ((n + m - 1) // m) * m


def residual_kernel(x_ref, p_ref, w_ref, o_ref):
    # x_ref: (tm, C) row tile.  p_ref: (3, C) packed [gamma; beta; bias].  w_ref: (C, C) bf16.
    x = x_ref[...].astype(jnp.float32)

    # ---- LayerNorm over the feature (lane) axis: one-pass statistics, f32 ----
    mean = jnp.mean(x, axis=-1, keepdims=True)
    mean_sq = jnp.mean(x * x, axis=-1, keepdims=True)
    var = jnp.maximum(mean_sq - mean * mean, 0.0)       # guard tiny negative from rounding
    inv = jax.lax.rsqrt(var + LN_EPS)                   # EUP rsqrt

    gamma = p_ref[0:1, :].astype(jnp.float32)
    beta = p_ref[1:2, :].astype(jnp.float32)
    bias = p_ref[2:3, :].astype(jnp.float32)
    y = (x - mean) * inv * gamma + beta

    # ---- sublayer: Linear(C -> C) on the MXU, bf16 operands / f32 accumulation ----
    z = jnp.dot(y.astype(jnp.bfloat16), w_ref[...], preferred_element_type=jnp.float32)
    z = z + bias

    # ---- dropout (eval mode => identity) + residual add in f32 ----
    o_ref[...] = (x + z).astype(o_ref.dtype)


def _build_call(rows, C, tm_eff, io_dtype, vmem_limit, cost, *, single_buffer_w):
    if single_buffer_w:
        # W's index_map is constant so it is never re-fetched; single buffering halves its
        # VMEM residency (matters on v7x once C grows).
        w_spec = pl.BlockSpec((C, C), lambda i: (0, 0), pipeline_mode=pl.Buffered(1))
    else:
        w_spec = pl.BlockSpec((C, C), lambda i: (0, 0))

    return pl.pallas_call(
        residual_kernel,
        out_shape=jax.ShapeDtypeStruct((rows, C), io_dtype),
        grid_spec=pltpu.PrefetchScalarGridSpec(
            num_scalar_prefetch=0,
            grid=(pl.cdiv(rows, tm_eff),),
            in_specs=[
                pl.BlockSpec((tm_eff, C), lambda i: (i, 0)),  # x rows (ragged tail masked)
                pl.BlockSpec((3, C), lambda i: (0, 0)),       # packed [gamma; beta; bias]
                w_spec,                                        # W, bf16, VMEM-resident
            ],
            out_specs=pl.BlockSpec((tm_eff, C), lambda i: (i, 0)),
        ),
        compiler_params=pltpu.CompilerParams(
            dimension_semantics=("parallel",),
            vmem_limit_bytes=vmem_limit,
        ),
        cost_estimate=cost,
    )


def residual_connection(x, params, w_bf16, *, tm=1024):
    """x: (B, T, C) -> (B, T, C).

    params: (3, C) f32 packed [gamma; beta; linear_bias] (parameter-level packing).
    w_bf16: (C, C) bf16 Linear weight, pre-transposed for y @ W (parameter-level cast).
    """
    B, T, C = x.shape
    rows = B * T
    x2 = x.reshape(rows, C)

    # Adaptive row tile: big tiles for real workloads, clamp for tiny inputs, and keep the
    # grid >= 2 steps so both v7x TensorCores get work under dimension_semantics=parallel.
    tm_eff = max(8, min(tm,
                        _round_up(rows, 8),
                        _round_up(pl.cdiv(rows, 2), 8)))

    itemsize = x.dtype.itemsize
    tile_io = tm_eff * C * itemsize           # one I/O row tile in the I/O dtype
    tile_f32 = tm_eff * C * 4                 # in-kernel f32 working tile
    vmem_need = (2 * tile_io                  # input x, double-buffered
                 + 2 * tile_io                # output, double-buffered
                 + 2 * C * C * 2              # W bf16 (worst case 2 buffers)
                 + 2 * 3 * C * 4              # packed params
                 + 4 * tile_f32)              # f32 intermediates / spills
    vmem_limit = int(min(vmem_need + (8 << 20), 48 << 20))  # modest headroom, v7x-safe cap

    cost = pl.CostEstimate(
        flops=2 * rows * C * C,
        transcendentals=rows,                 # one rsqrt per row
        bytes_accessed=2 * rows * C * itemsize + C * C * 2 + 3 * C * 4,
    )

    try:
        out = _build_call(rows, C, tm_eff, x.dtype, vmem_limit, cost,
                          single_buffer_w=True)(x2, params, w_bf16)
    except Exception:
        # TODO(synk): pipeline_mode=pl.Buffered(1) not supported in this build; default
        # double-buffered W spec (64 KiB at C=128, so no practical impact here).
        out = _build_call(rows, C, tm_eff, x.dtype, vmem_limit, cost,
                          single_buffer_w=False)(x2, params, w_bf16)

    return out.reshape(B, T, C)


def reference(x, gamma, beta, w, b):
    """Pure-JAX f32 reference (PyTorch ResidualConnection semantics, eval-mode dropout)."""
    xf = x.astype(jnp.float32)
    mean = jnp.mean(xf, axis=-1, keepdims=True)
    var = jnp.mean((xf - mean) ** 2, axis=-1, keepdims=True)
    y = (xf - mean) * jax.lax.rsqrt(var + LN_EPS) * gamma + beta
    z = y @ w.astype(jnp.float32) + b
    return xf + z


def _run_case(key, B, T, C, io_dtype, atol, rtol):
    kx, kw, kb, kg, kbe = jax.random.split(key, 5)
    x = jax.random.normal(kx, (B, T, C), dtype=jnp.float32).astype(io_dtype)
    # LayerNorm params (PyTorch init weight=1, bias=0) perturbed deterministically.
    gamma = 1.0 + 0.01 * jax.random.normal(kg, (C,), dtype=jnp.float32)
    beta = 0.01 * jax.random.normal(kbe, (C,), dtype=jnp.float32)
    # Deterministic sublayer Linear(C, C).
    w = jax.random.normal(kw, (C, C), dtype=jnp.float32) / jnp.sqrt(C)
    b = 0.01 * jax.random.normal(kb, (C,), dtype=jnp.float32)

    # Parameter-level prep (done once per model, not per forward call).
    params = jnp.stack([gamma, beta, b], axis=0)   # (3, C) packed LN/bias params, f32
    w_bf16 = w.astype(jnp.bfloat16)                # bf16 MXU weight, hoisted cast

    out = jax.block_until_ready(residual_connection(x, params, w_bf16))
    ref = reference(x, gamma, beta, w, b)
    assert out.shape == (B, T, C) and out.dtype == io_dtype
    # bf16 MXU operands => loosened tolerance vs f32 reference.
    assert jnp.allclose(out.astype(jnp.float32), ref, atol=atol, rtol=rtol), \
        f"mismatch vs reference for shape {(B, T, C)} dtype {io_dtype}"


if __name__ == "__main__":
    key = jax.random.PRNGKey(0)
    k1, k2, k3 = jax.random.split(key, 3)
    # Module-spec small shape (B=2, T=8, C=128): tiny-row clamp, grid still has 2 steps.
    _run_case(k1, B=2, T=8, C=128, io_dtype=jnp.float32, atol=3e-2, rtol=3e-2)
    # Ragged-tail path: rows=300, tm_eff=152, grid=2, last block partially masked (no pad/slice).
    _run_case(k2, B=3, T=100, C=128, io_dtype=jnp.float32, atol=3e-2, rtol=3e-2)
    # bf16 I/O path: halves both HBM streams when the surrounding model runs in bf16.
    _run_case(k3, B=2, T=512, C=128, io_dtype=jnp.bfloat16, atol=5e-2, rtol=5e-2)
    print("KERNEL_OK")
</pallas_src>

<mosaic_0001>
module attributes {stable_mosaic.version = 11 : i64} {
  func.func @residual_kernel(%arg0: i32, %arg1: memref<8x128xf32, #tpu.memory_space<vmem>>, %arg2: memref<3x128xf32, #tpu.memory_space<vmem>>, %arg3: memref<128x128xbf16, #tpu.memory_space<vmem>>, %arg4: memref<8x128xf32, #tpu.memory_space<vmem>>) attributes {dimension_semantics = [#tpu.dimension_semantics<parallel>], iteration_bounds = array<i64: 2>, scalar_prefetch = 0 : i64, scratch_operands = 0 : i64, tpu.core_type = #tpu.core_type<tc>, window_params = [{transform_indices = @transform_0, window_bounds = array<i64: 8, 128>}, {pipeline_mode = #tpu.pipeline_mode<synchronous>, transform_indices = @transform_1, window_bounds = array<i64: 3, 128>}, {pipeline_mode = #tpu.pipeline_mode<synchronous>, transform_indices = @transform_2, window_bounds = array<i64: 128, 128>}, {transform_indices = @transform_3, window_bounds = array<i64: 8, 128>}]} {
    %c0 = arith.constant 0 : index
    %c0_0 = arith.constant 0 : index
    %0 = vector.load %arg1[%c0, %c0_0] : memref<8x128xf32, #tpu.memory_space<vmem>>, vector<8x128xf32>
    %cst = arith.constant dense<0.000000e+00> : vector<8xf32>
    %1 = vector.multi_reduction <add>, %0, %cst [1] : vector<8x128xf32> to vector<8xf32>
    %2 = vector.shape_cast %1 : vector<8xf32> to vector<8x1xf32>
    %cst_1 = arith.constant 1.280000e+02 : f32
    %3 = vector.broadcast %cst_1 : f32 to vector<8x1xf32>
    %4 = arith.divf %2, %3 : vector<8x1xf32>
    %5 = arith.mulf %0, %0 : vector<8x128xf32>
    %cst_2 = arith.constant dense<0.000000e+00> : vector<8xf32>
    %6 = vector.multi_reduction <add>, %5, %cst_2 [1] : vector<8x128xf32> to vector<8xf32>
    %7 = vector.shape_cast %6 : vector<8xf32> to vector<8x1xf32>
    %cst_3 = arith.constant 1.280000e+02 : f32
    %8 = vector.broadcast %cst_3 : f32 to vector<8x1xf32>
    %9 = arith.divf %7, %8 : vector<8x1xf32>
    %10 = arith.mulf %4, %4 : vector<8x1xf32>
    %11 = arith.subf %9, %10 : vector<8x1xf32>
    %cst_4 = arith.constant 0.000000e+00 : f32
    %12 = vector.broadcast %cst_4 : f32 to vector<8x1xf32>
    %13 = arith.maximumf %11, %12 : vector<8x1xf32>
    %cst_5 = arith.constant 9.99999974E-6 : f32
    %14 = vector.broadcast %cst_5 : f32 to vector<8x1xf32>
    %15 = arith.addf %13, %14 : vector<8x1xf32>
    %16 = math.rsqrt %15 : vector<8x1xf32>
    %c0_6 = arith.constant 0 : index
    %c0_7 = arith.constant 0 : index
    %17 = vector.load %arg2[%c0_6, %c0_7] : memref<3x128xf32, #tpu.memory_space<vmem>>, vector<1x128xf32>
    %c1 = arith.constant 1 : index
    %c0_8 = arith.constant 0 : index
    %18 = vector.load %arg2[%c1, %c0_8] : memref<3x128xf32, #tpu.memory_space<vmem>>, vector<1x128xf32>
    %c2 = arith.constant 2 : index
    %c0_9 = arith.constant 0 : index
    %19 = vector.load %arg2[%c2, %c0_9] : memref<3x128xf32, #tpu.memory_space<vmem>>, vector<1x128xf32>
    %20 = vector.broadcast %4 : vector<8x1xf32> to vector<8x128xf32>
    %21 = arith.subf %0, %20 : vector<8x128xf32>
    %22 = vector.broadcast %16 : vector<8x1xf32> to vector<8x128xf32>
    %23 = arith.mulf %21, %22 : vector<8x128xf32>
    %24 = vector.broadcast %17 : vector<1x128xf32> to vector<8x128xf32>
    %25 = arith.mulf %23, %24 : vector<8x128xf32>
    %26 = vector.broadcast %18 : vector<1x128xf32> to vector<8x128xf32>
    %27 = arith.addf %25, %26 : vector<8x128xf32>
    %28 = arith.truncf %27 : vector<8x128xf32> to vector<8x128xbf16>
    %c0_10 = arith.constant 0 : index
    %c0_11 = arith.constant 0 : index
    %29 = vector.load %arg3[%c0_10, %c0_11] : memref<128x128xbf16, #tpu.memory_space<vmem>>, vector<128x128xbf16>
    %cst_12 = arith.constant dense<0.000000e+00> : vector<8x128xf32>
    %30 = tpu.matmul %28, %29, %cst_12 {dimension_numbers = #tpu.dot_dimension_numbers<[1], [0], [0], [1], [0, 0, 1, 1], [], []>} : vector<8x128xbf16>, vector<128x128xbf16>, vector<8x128xf32> -> vector<8x128xf32>
    %31 = vector.broadcast %19 : vector<1x128xf32> to vector<8x128xf32>
    %32 = arith.addf %30, %31 : vector<8x128xf32>
    %33 = arith.addf %0, %32 : vector<8x128xf32>
    %c0_13 = arith.constant 0 : index
    %c0_14 = arith.constant 0 : index
    %34 = vector.load %arg4[%c0_13, %c0_14] : memref<8x128xf32, #tpu.memory_space<vmem>>, vector<8x128xf32>
    tpu.vector_store %arg4[%c0_13, %c0_14], %33 {strides = array<i32>} : memref<8x128xf32, #tpu.memory_space<vmem>>, vector<8x128xf32>,
    return
  }
  func.func @transform_0(%arg0: i32) -> (i32, i32) {
    %c0_i32 = arith.constant 0 : i32
    %c0_i32_0 = arith.constant 0 : i32
    return %arg0, %c0_i32 : i32, i32
  }
  func.func @transform_1(%arg0: i32) -> (i32, i32) {
    %c0_i32 = arith.constant 0 : i32
    %c0_i32_0 = arith.constant 0 : i32
    %c0_i32_1 = arith.constant 0 : i32
    return %c0_i32, %c0_i32_0 : i32, i32
  }
  func.func @transform_2(%arg0: i32) -> (i32, i32) {
    %c0_i32 = arith.constant 0 : i32
    %c0_i32_0 = arith.constant 0 : i32
    %c0_i32_1 = arith.constant 0 : i32
    return %c0_i32, %c0_i32_0 : i32, i32
  }
  func.func @transform_3(%arg0: i32) -> (i32, i32) {
    %c0_i32 = arith.constant 0 : i32
    %c0_i32_0 = arith.constant 0 : i32
    return %arg0, %c0_i32 : i32, i32
  }
}

module attributes {stable_mosaic.version = 11 : i64} {
  func.func @residual_kernel(%arg0: i32, %arg1: memref<8x128xf32, #tpu.memory_space<vmem>>, %arg2: memref<3x128xf32, #tpu.memory_space<vmem>>, %arg3: memref<128x128xbf16, #tpu.memory_space<vmem>>, %arg4: memref<8x128xf32, #tpu.memory_space<vmem>>) attributes {dimension_semantics = [#tpu.dimension_semantics<parallel>], iteration_bounds = array<i64: 2>, scalar_prefetch = 0 : i64, scratch_operands = 0 : i64, tpu.core_type = #tpu.core_type<tc>, window_params = [{transform_indices = @transform_0, window_bounds = array<i64: 8, 128>}, {pipeline_mode = #tpu.pipeline_mode<synchronous>, transform_indices = @transform_1, window_bounds = array<i64: 3, 128>}, {pipeline_mode = #tpu.pipeline_mode<synchronous>, transform_indices = @transform_2, window_bounds = array<i64: 128, 128>}, {transform_indices = @transform_3, window_bounds = array<i64: 8, 128>}]} {
    %c0 = arith.constant 0 : index
    %c0_0 = arith.constant 0 : index
    %0 = vector.load %arg1[%c0, %c0_0] : memref<8x128xf32, #tpu.memory_space<vmem>>, vector<8x128xf32>
    %cst = arith.constant dense<0.000000e+00> : vector<8xf32>
    %1 = vector.multi_reduction <add>, %0, %cst [1] : vector<8x128xf32> to vector<8xf32>
    %2 = vector.shape_cast %1 : vector<8xf32> to vector<8x1xf32>
    %cst_1 = arith.constant 1.280000e+02 : f32
    %3 = vector.broadcast %cst_1 : f32 to vector<8x1xf32>
    %4 = arith.divf %2, %3 : vector<8x1xf32>
    %5 = arith.mulf %0, %0 : vector<8x128xf32>
    %cst_2 = arith.constant dense<0.000000e+00> : vector<8xf32>
    %6 = vector.multi_reduction <add>, %5, %cst_2 [1] : vector<8x128xf32> to vector<8xf32>
    %7 = vector.shape_cast %6 : vector<8xf32> to vector<8x1xf32>
    %cst_3 = arith.constant 1.280000e+02 : f32
    %8 = vector.broadcast %cst_3 : f32 to vector<8x1xf32>
    %9 = arith.divf %7, %8 : vector<8x1xf32>
    %10 = arith.mulf %4, %4 : vector<8x1xf32>
    %11 = arith.subf %9, %10 : vector<8x1xf32>
    %cst_4 = arith.constant 0.000000e+00 : f32
    %12 = vector.broadcast %cst_4 : f32 to vector<8x1xf32>
    %13 = arith.maximumf %11, %12 : vector<8x1xf32>
    %cst_5 = arith.constant 9.99999974E-6 : f32
    %14 = vector.broadcast %cst_5 : f32 to vector<8x1xf32>
    %15 = arith.addf %13, %14 : vector<8x1xf32>
    %16 = math.rsqrt %15 : vector<8x1xf32>
    %c0_6 = arith.constant 0 : index
    %c0_7 = arith.constant 0 : index
    %17 = vector.load %arg2[%c0_6, %c0_7] : memref<3x128xf32, #tpu.memory_space<vmem>>, vector<1x128xf32>
    %c1 = arith.constant 1 : index
    %c0_8 = arith.constant 0 : index
    %18 = vector.load %arg2[%c1, %c0_8] : memref<3x128xf32, #tpu.memory_space<vmem>>, vector<1x128xf32>
    %c2 = arith.constant 2 : index
    %c0_9 = arith.constant 0 : index
    %19 = vector.load %arg2[%c2, %c0_9] : memref<3x128xf32, #tpu.memory_space<vmem>>, vector<1x128xf32>
    %20 = vector.broadcast %4 : vector<8x1xf32> to vector<8x128xf32>
    %21 = arith.subf %0, %20 : vector<8x128xf32>
    %22 = vector.broadcast %16 : vector<8x1xf32> to vector<8x128xf32>
    %23 = arith.mulf %21, %22 : vector<8x128xf32>
    %24 = vector.broadcast %17 : vector<1x128xf32> to vector<8x128xf32>
    %25 = arith.mulf %23, %24 : vector<8x128xf32>
    %26 = vector.broadcast %18 : vector<1x128xf32> to vector<8x128xf32>
    %27 = arith.addf %25, %26 : vector<8x128xf32>
    %28 = arith.truncf %27 : vector<8x128xf32> to vector<8x128xbf16>
    %c0_10 = arith.constant 0 : index
    %c0_11 = arith.constant 0 : index
    %29 = vector.load %arg3[%c0_10, %c0_11] : memref<128x128xbf16, #tpu.memory_space<vmem>>, vector<128x128xbf16>
    %cst_12 = arith.constant dense<0.000000e+00> : vector<8x128xf32>
    %30 = tpu.matmul %28, %29, %cst_12 {dimension_numbers = #tpu.dot_dimension_numbers<[1], [0], [0], [1], [0, 0, 1, 1], [], []>} : vector<8x128xbf16>, vector<128x128xbf16>, vector<8x128xf32> -> vector<8x128xf32>
    %31 = vector.broadcast %19 : vector<1x128xf32> to vector<8x128xf32>
    %32 = arith.addf %30, %31 : vector<8x128xf32>
    %33 = arith.addf %0, %32 : vector<8x128xf32>
    %c0_13 = arith.constant 0 : index
    %c0_14 = arith.constant 0 : index
    %34 = vector.load %arg4[%c0_13, %c0_14] : memref<8x128xf32, #tpu.memory_space<vmem>>, vector<8x128xf32>
    tpu.vector_store %arg4[%c0_13, %c0_14], %33 {strides = array<i32>} : memref<8x128xf32, #tpu.memory_space<vmem>>, vector<8x128xf32>,
    return
  }
  func.func @transform_0(%arg0: i32) -> (i32, i32) {
    %c0_i32 = arith.constant 0 : i32
    %c0_i32_0 = arith.constant 0 : i32
    return %arg0, %c0_i32 : i32, i32
  }
  func.func @transform_1(%arg0: i32) -> (i32, i32) {
    %c0_i32 = arith.constant 0 : i32
    %c0_i32_0 = arith.constant 0 : i32
    %c0_i32_1 = arith.constant 0 : i32
    return %c0_i32, %c0_i32_0 : i32, i32
  }
  func.func @transform_2(%arg0: i32) -> (i32, i32) {
    %c0_i32 = arith.constant 0 : i32
    %c0_i32_0 = arith.constant 0 : i32
    %c0_i32_1 = arith.constant 0 : i32
    return %c0_i32, %c0_i32_0 : i32, i32
  }
  func.func @transform_3(%arg0: i32) -> (i32, i32) {
    %c0_i32 = arith.constant 0 : i32
    %c0_i32_0 = arith.constant 0 : i32
    return %arg0, %c0_i32 : i32, i32
  }
}

</mosaic_0001>

<llo_original>
// kernel: tpu_custom_call.1
$region0: #{tpu_custom_call.1}
  #allocation0 [shape = 'u32[]', space=smem, size = 0x4, offset = 0x4, fixed_abs, tag = 'smem constant byte address 0x4 - core index']
  #allocation1 [shape = 'u32[144,128]{1,0:T(1,128)}', space=vmem, size = 0x12000, scoped, tag = 'internal scratch']
  %s0 = inlined_call_operand.hbm [shape: f32[16,128], index: 0, kind: input, shape index: {}]
  %s1 = inlined_call_operand.hbm [shape: f32[3,128], index: 1, kind: input, shape index: {}]
  %s2 = inlined_call_operand.hbm [shape: bf16[128,128], index: 2, kind: input, shape index: {}]
  %s3 = inlined_call_operand.hbm [shape: f32[16,128], index: 3, kind: output, shape index: {}]
  %s4 = sld [smem:[#allocation0]]
  $region57: #{tpu_custom_call.1} parent=0
    _
  %s6 = ssub.s32 1, %s4
  %s7 = scalar_select 0, %s6, %s4
  $region1: #{tpu_custom_call.1} parent=0
    #allocation2 [shape = 'u8[8192]{0}', space=vmem, size = 0x2000, scoped, tag = 'input window, operand 0']
    #allocation3 [shape = 's32[2]{0}', space=sflag, size = 0x8, scoped, tag = 'scoped memory for tpu_custom_call.1']
    #allocation4 [shape = 's32[2]{0}', space=sflag, size = 0x8, scoped, tag = 'scoped memory for tpu_custom_call.1']
    #allocation5 [shape = 'u8[2048]{0}', space=vmem, size = 0x800, scoped, tag = 'input window, operand 1, single buffered']
    #allocation6 [shape = 's32[1]{0}', space=sflag, size = 0x4, scoped, tag = 'scoped memory for tpu_custom_call.1']
    #allocation7 [shape = 'u8[32768]{0}', space=vmem, size = 0x8000, scoped, tag = 'input window, operand 2, single buffered']
    #allocation8 [shape = 'u8[8192]{0}', space=vmem, size = 0x2000, scoped, tag = 'output window, operand 0']
    %8 = vsyncpa [#allocation3], 0
    %s9 = scalar_lea.sflag [#allocation3], 1
    %10 = vsyncpa %s9, 0
    %11 = vsyncpa [#allocation6], 0
    %12 = vsyncpa [#allocation4], 0
    %s13 = scalar_lea.sflag [#allocation4], 1
    %14 = vsyncpa %s13, 0
    loop: start=0, step=1, limit=4
    $region2: #{tpu_custom_call.1} parent=1 // loop_pre_header
      _
    $region3: #{tpu_custom_call.1} parent=1 // loop_header
      %s16 = sphi 0, %s20
      %p17 = scmp.ge.s32.totalorder %s16, 4
      %s26 = sphi 0, %s28
      %s29 = sphi 0, %s26
      %s30 = sphi 0, %s29
      %s46 = sphi 0, %s30
      %s50 = sphi 0, %s50
      %s52 = sphi 0, %s50
      %s53 = sphi 0, %s52
      %s67 = sphi 0, %s53
      %s71 = sphi 0, %s71
      %s73 = sphi 0, %s71
      %s74 = sphi 0, %s73
      %s88 = sphi 0, %s74
      %s94 = sphi 0, %s96
      %s97 = sphi 0, %s94
      %s98 = sphi 0, %s97
      %s114 = sphi 0, %s98
    $region4: #{tpu_custom_call.1} parent=1 // loop_header_branch
      %19 = sbr.rel (%p17) target = $region8
    $region5: #{tpu_custom_call.1} parent=1 // loop_body
      %s21 = ssub.s32 %s16, 1
      %s22 = ssub.s32 %s16, 2
      %s23 = sadd.s32 %s16, 1
      %s24 = ssub.s32 %s16, %s23
      %p25 = scmp.eq.s32.totalorder %s24, 0
      %s27 = sadd.s32 %s26, 1
      %s28 = scalar_select %p25, %s26, %s27
      %p31 = pneg %p25
      %p32 = scmp.eq.s32.totalorder %s16, 1
      %p33 = por %p31, %p32
      %p34 = scmp.ne.s32.totalorder %s26, %s29
      %p35 = scmp.eq.s32.totalorder %s16, 0
      %p36 = por %p34, %p35
      %p37 = scmp.ne.s32.totalorder %s26, %s29
      %p38 = scmp.eq.s32.totalorder %s21, 1
      %p39 = por %p37, %p38
      %p40 = scmp.ne.s32.totalorder %s29, %s30
      %p41 = scmp.eq.s32.totalorder %s21, 0
      %p42 = por %p40, %p41
      %p43 = scmp.ne.s32.totalorder %s29, %s30
      %p44 = scmp.eq.s32.totalorder %s22, 1
      %p45 = por %p43, %p44
      %p47 = scmp.ne.s32.totalorder %s30, %s46
      %p48 = scmp.eq.s32.totalorder %s22, 0
      %p49 = por %p47, %p48
      %s51 = sadd.s32 %s50, 1
      %p54 = scmp.eq.s32.totalorder %s16, 1
      %p55 = scmp.ne.s32.totalorder %s50, %s52
      %p56 = scmp.eq.s32.totalorder %s16, 0
      %p57 = por %p55, %p56
      %p58 = scmp.ne.s32.totalorder %s50, %s52
      %p59 = scmp.eq.s32.totalorder %s21, 1
      %p60 = por %p58, %p59
      %p61 = scmp.ne.s32.totalorder %s52, %s53
      %p62 = scmp.eq.s32.totalorder %s21, 0
      %p63 = por %p61, %p62
      %p64 = scmp.ne.s32.totalorder %s52, %s53
      %p65 = scmp.eq.s32.totalorder %s22, 1
      %p66 = por %p64, %p65
      %p68 = scmp.ne.s32.totalorder %s53, %s67
      %p69 = scmp.eq.s32.totalorder %s22, 0
      %p70 = por %p68, %p69
      %s72 = sadd.s32 %s71, 1
      %p75 = scmp.eq.s32.totalorder %s16, 1
      %p76 = scmp.ne.s32.totalorder %s71, %s73
      %p77 = scmp.eq.s32.totalorder %s16, 0
      %p78 = por %p76, %p77
      %p79 = scmp.ne.s32.totalorder %s71, %s73
      %p80 = scmp.eq.s32.totalorder %s21, 1
      %p81 = por %p79, %p80
      %p82 = scmp.ne.s32.totalorder %s73, %s74
      %p83 = scmp.eq.s32.totalorder %s21, 0
      %p84 = por %p82, %p83
      %p85 = scmp.ne.s32.totalorder %s73, %s74
      %p86 = scmp.eq.s32.totalorder %s22, 1
      %p87 = por %p85, %p86
      %p89 = scmp.ne.s32.totalorder %s74, %s88
      %p90 = scmp.eq.s32.totalorder %s22, 0
      %p91 = por %p89, %p90
      %s92 = ssub.s32 %s16, %s23
      %p93 = scmp.eq.s32.totalorder %s92, 0
      %s95 = sadd.s32 %s94, 1
      %s96 = scalar_select %p93, %s94, %s95
      %p99 = pneg %p93
      %p100 = scmp.eq.s32.totalorder %s16, 1
      %p101 = por %p99, %p100
      %p102 = scmp.ne.s32.totalorder %s94, %s97
      %p103 = scmp.eq.s32.totalorder %s16, 0
      %p104 = por %p102, %p103
      %p105 = scmp.ne.s32.totalorder %s94, %s97
      %p106 = scmp.eq.s32.totalorder %s21, 1
      %p107 = por %p105, %p106
      %p108 = scmp.ne.s32.totalorder %s97, %s98
      %p109 = scmp.eq.s32.totalorder %s21, 0
      %p110 = por %p108, %p109
      %p111 = scmp.ne.s32.totalorder %s97, %s98
      %p112 = scmp.eq.s32.totalorder %s22, 1
      %p113 = por %p111, %p112
      %p115 = scmp.ne.s32.totalorder %s98, %s114
      %p116 = scmp.eq.s32.totalorder %s22, 0
      %p117 = por %p115, %p116
      %p118 = scmp.le.s32.totalorder 1, %s16
      %p119 = scmp.lt.s32.totalorder %s16, 3
      %p120 = pnand %p118, %p119
      %p121 = pneg %p120
      // Predicated region
      $region9: #{tpu_custom_call.1} parent=5 // pred_check
        _
      $region10: #{tpu_custom_call.1} parent=5 // pred_check_branch
        %123 = sbr.rel (%p120) target = $region12
      $region11: #{tpu_custom_call.1} parent=5 // pred_region
        %s124 = ssub.s32 %s16, 1
        // Predicated region
        $region13: #{tpu_custom_call.1} parent=11 // pred_check
          %p125 = pneg %p63
        $region14: #{tpu_custom_call.1} parent=11 // pred_check_branch
          %127 = sbr.rel (%p125) target = $region16
        $region15: #{tpu_custom_call.1} parent=11 // pred_region
          %s129 = ssub.s32 64, 64
          %130 = vsyncadd [#allocation6], %s129
          %s132 = sshll.u32 [#allocation5], 4
          %s133 = int_to_ptr.vmem [resolvable:$true] %s132
          %135 = dma.hbm_to_vmem [thread:$0]  %s1, 64, %s133, [#allocation6]
        $region16: #{tpu_custom_call.1} parent=11 // pred_fallthru
          _
        // Predicated region
        $region17: #{tpu_custom_call.1} parent=11 // pred_check
          %p136 = pneg %p84
        $region18: #{tpu_custom_call.1} parent=11 // pred_check_branch
          %138 = sbr.rel (%p136) target = $region20
        $region19: #{tpu_custom_call.1} parent=11 // pred_region
          %s140 = ssub.s32 1024, 1024
          %141 = vsyncadd [#allocation6], %s140
          %s142 = sshll.u32 [#allocation7], 4
          %s143 = int_to_ptr.vmem [resolvable:$true] %s142
          %148 = dma.hbm_to_vmem [thread:$0]  %s2, 1024, %s143, [#allocation6], 64, 64, 4
        $region20: #{tpu_custom_call.1} parent=11 // pred_fallthru
          _
      $region12: #{tpu_custom_call.1} parent=5 // pred_fallthru
        _
      %p149 = scmp.lt.s32.totalorder %s16, 2
      // Predicated region
      $region21: #{tpu_custom_call.1} parent=5 // pred_check
        %p150 = pneg %p149
      $region22: #{tpu_custom_call.1} parent=5 // pred_check_branch
        %152 = sbr.rel (%p150) target = $region24
      $region23: #{tpu_custom_call.1} parent=5 // pred_region
        // Predicated region
        $region25: #{tpu_custom_call.1} parent=23 // pred_check
          %p153 = pneg %p36
        $region26: #{tpu_custom_call.1} parent=23 // pred_check_branch
          %155 = sbr.rel (%p153) target = $region28
        $region27: #{tpu_custom_call.1} parent=23 // pred_region
          %s156 = sand.u32 %s26, 1
          %s157 = scalar_lea.sflag [#allocation3], %s156
          %s158 = sand.u32 %s26, 1
          %s159 = smul.addr %s158, 8
          %s160 = scalar_lea.vmem [#allocation2], %s159
          %s162 = ssub.s32 128, 128
          %163 = vsyncadd %s157, %s162
          %s164 = smul.addr %s16, 128
          %s165 = scalar_lea.hbm %s0, %s164
          %s167 = sshll.u32 %s160, 4
          %s168 = int_to_ptr.vmem [resolvable:$true] %s167
          %170 = dma.hbm_to_vmem [thread:$0]  %s165, 128, %s168, %s157
        $region28: #{tpu_custom_call.1} parent=23 // pred_fallthru
          _
      $region24: #{tpu_custom_call.1} parent=5 // pred_fallthru
        _
      %p171 = scmp.le.s32.totalorder 1, %s16
      %p172 = scmp.lt.s32.totalorder %s16, 3
      %p173 = pnand %p171, %p172
      %p174 = pneg %p173
      // Predicated region
      $region29: #{tpu_custom_call.1} parent=5 // pred_check
        _
      $region30: #{tpu_custom_call.1} parent=5 // pred_check_branch
        %176 = sbr.rel (%p173) target = $region32
      $region31: #{tpu_custom_call.1} parent=5 // pred_region
        %s177 = ssub.s32 %s16, 1
        %s178 = sand.u32 %s29, 1
        %s179 = scalar_lea.sflag [#allocation3], %s178
        %s180 = sand.u32 %s29, 1
        %s181 = smul.addr %s180, 8
        %s182 = scalar_lea.vmem [#allocation2], %s181
        // Predicated region
        $region33: #{tpu_custom_call.1} parent=31 // pred_check
          %p183 = pneg %p42
        $region34: #{tpu_custom_call.1} parent=31 // pred_check_branch
          %185 = sbr.rel (%p183) target = $region36
        $region35: #{tpu_custom_call.1} parent=31 // pred_region
          %186 = dma.done %s179, 128
        $region36: #{tpu_custom_call.1} parent=31 // pred_fallthru
          _
        // Predicated region
        $region37: #{tpu_custom_call.1} parent=31 // pred_check
          %p187 = pneg %p63
        $region38: #{tpu_custom_call.1} parent=31 // pred_check_branch
          %189 = sbr.rel (%p187) target = $region40
        $region39: #{tpu_custom_call.1} parent=31 // pred_region
          %190 = dma.done [#allocation6], 64
        $region40: #{tpu_custom_call.1} parent=31 // pred_fallthru
          _
        // Predicated region
        $region41: #{tpu_custom_call.1} parent=31 // pred_check
          %p191 = pneg %p84
        $region42: #{tpu_custom_call.1} parent=31 // pred_check_branch
          %193 = sbr.rel (%p191) target = $region44
        $region43: #{tpu_custom_call.1} parent=31 // pred_region
          %194 = dma.done [#allocation6], 1024
        $region44: #{tpu_custom_call.1} parent=31 // pred_fallthru
          _
        %s195 = sand.u32 %s29, 1
        %s196 = scalar_lea.sflag [#allocation3], %s195
        %s197 = sand.u32 %s29, 1
        %s198 = smul.addr %s197, 8
        %s199 = scalar_lea.vmem [#allocation2], %s198
        %p200 = pneg %p42
        %p201 = pneg %p39
        %p202 = pneg %p63
        %p203 = pneg %p60
        %p204 = pneg %p84
        %p205 = pneg %p81
        %p206 = pneg %p110
        %p207 = pneg %p107
        %s208 = sand.u32 %s97, 1
        %s209 = scalar_lea.sflag [#allocation4], %s208
        %s210 = sand.u32 %s97, 1
        %s211 = smul.addr %s210, 8
        %s212 = scalar_lea.vmem [#allocation8], %s211
        %v214 = vld [vmem:[%s182] sm:$0xff]
        %215 = vadd.xlane.f32.xlu0 %v214
        %v216 = vpop.xlane.xlu0 %215
        %v217 = vrcp.pop 128.0
        %v218 = vmul.f32 %v216, %v217
        %v219 = vmul.f32 %v214, %v214
        %220 = vadd.xlane.f32.xlu0 %v219
        %v221 = vpop.xlane.xlu0 %220
        %v222 = vmul.f32 %v221, %v217
        %v223 = vmul.f32 %v218, %v218
        %v224 = vsub.f32 %v222, %v223
        %v225 = vmax.f32 %v224, 0.0
        %v226 = vadd.f32 %v225, 1e-05
        %v227 = vrsqrt.pop %v226
        %v228 = vld [vmem:[#allocation5] sm:$0x1]
        %v229 = vld [vmem:[#allocation5 + $0x1] sm:$0x1]
        %v230 = vld [vmem:[#allocation5 + $0x2] sm:$0x1]
        %v231 = vsub.f32 %v214, %v218
        %v232 = vmul.f32 %v231, %v227
        %v233 = vlaneseq
        %v234 = vshrl.u32 %v233, 7
        %v235 = vsub.s32 0, %v234
        %v236 = vrot.slane %v228, %v235
        %v237 = vmul.f32 %v232, %v236
        %v238 = vlaneseq
        %v239 = vshrl.u32 %v238, 7
        %v240 = vsub.s32 0, %v239
        %v241 = vrot.slane %v229, %v240
        %v242 = vadd.f32 %v237, %v241
        %v243 = vpack.c.bf16 %v242, %v242
        %v244 = vld [vmem:[#allocation7] sm:$0xf]
        %v245 = vld [vmem:[#allocation7 + $0x4] sm:$0xf]
        %v246 = vld [vmem:[#allocation7 + $0x8] sm:$0xf]
        %v247 = vld [vmem:[#allocation7 + $0xc] sm:$0xf]
        %v248 = vld [vmem:[#allocation7 + $0x10] sm:$0xf]
        %v249 = vld [vmem:[#allocation7 + $0x14] sm:$0xf]
        %v250 = vld [vmem:[#allocation7 + $0x18] sm:$0xf]
        %v251 = vld [vmem:[#allocation7 + $0x1c] sm:$0xf]
        %v252 = vld [vmem:[#allocation7 + $0x20] sm:$0xf]
        %v253 = vld [vmem:[#allocation7 + $0x24] sm:$0xf]
        %v254 = vld [vmem:[#allocation7 + $0x28] sm:$0xf]
        %v255 = vld [vmem:[#allocation7 + $0x2c] sm:$0xf]
        %v256 = vld [vmem:[#allocation7 + $0x30] sm:$0xf]
        %v257 = vld [vmem:[#allocation7 + $0x34] sm:$0xf]
        %v258 = vld [vmem:[#allocation7 + $0x38] sm:$0xf]
        %v259 = vld [vmem:[#allocation7 + $0x3c] sm:$0xf]
        %v260 = vlaneseq
        %v261 = vshrl.u32 %v260, 7
        %v262 = vsub.s32 0, %v261
        %v263 = vrot.slane %v230, %v262
        %v280 = vunpack.c.l.b16 %v244
        %v281 = vunpack.c.l.b16 %v245
        %v282 = vunpack.c.l.b16 %v246
        %v283 = vunpack.c.l.b16 %v247
        %v284 = vunpack.c.l.b16 %v248
        %v285 = vunpack.c.l.b16 %v249
        %v286 = vunpack.c.l.b16 %v250
        %v287 = vunpack.c.l.b16 %v251
        %v288 = vunpack.c.l.b16 %v252
        %v289 = vunpack.c.l.b16 %v253
        %v290 = vunpack.c.l.b16 %v254
        %v291 = vunpack.c.l.b16 %v255
        %v292 = vunpack.c.l.b16 %v256
        %v293 = vunpack.c.l.b16 %v257
        %v294 = vunpack.c.l.b16 %v258
        %v295 = vunpack.c.l.b16 %v259
        %v296 = vpack.c.b16 %v281, %v280
        %v297 = vpack.c.b16 %v283, %v282
        %v298 = vpack.c.b16 %v285, %v284
        %v299 = vpack.c.b16 %v287, %v286
        %v300 = vpack.c.b16 %v289, %v288
        %v301 = vpack.c.b16 %v291, %v290
        %v302 = vpack.c.b16 %v293, %v292
        %v303 = vpack.c.b16 %v295, %v294
        %312 = vmatprep.subr.bf16.mxu0 0
        %313 = vmatpush1.bf16.msra.mxu0 %v296
        %314 = vmatprep.subr.bf16.mxu0 0
        %315 = vmatpush1.bf16.msra.mxu0 %v297
        %316 = vmatprep.subr.bf16.mxu0 0
        %317 = vmatpush1.bf16.msra.mxu0 %v298
        %318 = vmatprep.subr.bf16.mxu0 0
        %319 = vmatpush1.bf16.msra.mxu0 %v299
        %320 = vmatprep.subr.bf16.mxu0 0
        %321 = vmatpush1.bf16.msra.mxu0 %v300
        %322 = vmatprep.subr.bf16.mxu0 0
        %323 = vmatpush1.bf16.msra.mxu0 %v301
        %324 = vmatprep.subr.bf16.mxu0 0
        %325 = vmatpush1.bf16.msra.mxu0 %v302
        %326 = vmatprep.subr.bf16.mxu0 0
        %327 = vmatpush1.bf16.msra.mxu0 %v303
        %328 = vmatprep.subr.bf16.mxu0 0
        %329 = vmatpush1.bf16.msra.mxu0 0
        %330 = vmatprep.subr.bf16.mxu0 0
        %331 = vmatpush1.bf16.msra.mxu0 0
        %332 = vmatprep.subr.bf16.mxu0 0
        %333 = vmatpush1.bf16.msra.mxu0 0
        %334 = vmatprep.subr.bf16.mxu0 0
        %335 = vmatpush1.bf16.msra.mxu0 0
        %336 = vmatprep.subr.bf16.mxu0 0
        %337 = vmatpush1.bf16.msra.mxu0 0
        %338 = vmatprep.subr.bf16.mxu0 0
        %339 = vmatpush1.bf16.msra.mxu0 0
        %340 = vmatprep.subr.bf16.mxu0 0
        %341 = vmatpush1.bf16.msra.mxu0 0
        %342 = vmatprep.subr.bf16.mxu0 0
        %343 = vmatpush1.bf16.msra.mxu0 0
        %344 = vmatprep.mubr.bf16.mxu0 0
        %345 = vmatmul.mubr.bf16.gmra.mrb[0].mxu0 %v243
        %v346 = vpop.f32.mrb[0].mxu0
        %v347 = vadd.f32 %v263, %v346
        %v348 = vpop.f32.mrb[0].mxu0
        %v349 = vpop.f32.mrb[0].mxu0
        %v350 = vpop.f32.mrb[0].mxu0
        %351 = vdwg.mxu0
        %v352 = vadd.f32 %v214, %v347
        %353 = vst [vmem:[%s212] sm:$0xff] %v352
        %s354 = sand.u32 %s97, 1
        %s355 = scalar_lea.sflag [#allocation4], %s354
        %s356 = sand.u32 %s97, 1
        %s357 = smul.addr %s356, 8
        %s358 = scalar_lea.vmem [#allocation8], %s357
        // Predicated region
        $region45: #{tpu_custom_call.1} parent=31 // pred_check
          %p359 = pneg %p107
        $region46: #{tpu_custom_call.1} parent=31 // pred_check_branch
          %361 = sbr.rel (%p359) target = $region48
        $region47: #{tpu_custom_call.1} parent=31 // pred_region
          %s363 = ssub.s32 128, 128
          %364 = vsyncadd %s355, %s363
          %s365 = smul.addr %s21, 128
          %s366 = scalar_lea.hbm %s3, %s365
          %s368 = sshll.u32 %s358, 4
          %s369 = int_to_ptr.vmem [resolvable:$true] %s368
          %371 = dma.vmem_to_hbm [thread:$0]  %s369, 128, %s366, %s355
        $region48: #{tpu_custom_call.1} parent=31 // pred_fallthru
          _
      $region32: #{tpu_custom_call.1} parent=5 // pred_fallthru
        _
      %p372 = scmp.le.s32.totalorder 2, %s16
      // Predicated region
      $region49: #{tpu_custom_call.1} parent=5 // pred_check
        %p373 = pneg %p372
      $region50: #{tpu_custom_call.1} parent=5 // pred_check_branch
        %375 = sbr.rel (%p373) target = $region52
      $region51: #{tpu_custom_call.1} parent=5 // pred_region
        %s376 = ssub.s32 %s16, 2
        // Predicated region
        $region53: #{tpu_custom_call.1} parent=51 // pred_check
          %p377 = pneg %p113
        $region54: #{tpu_custom_call.1} parent=51 // pred_check_branch
          %379 = sbr.rel (%p377) target = $region56
        $region55: #{tpu_custom_call.1} parent=51 // pred_region
          %s380 = sand.u32 %s98, 1
          %s381 = scalar_lea.sflag [#allocation4], %s380
          %s382 = sand.u32 %s98, 1
          %s383 = smul.addr %s382, 8
          %s384 = scalar_lea.vmem [#allocation8], %s383
          %385 = dma.done %s381, 128
        $region56: #{tpu_custom_call.1} parent=51 // pred_fallthru
          _
      $region52: #{tpu_custom_call.1} parent=5 // pred_fallthru
        _
    $region6: #{tpu_custom_call.1} parent=1 // loop_footer
      %s20 = sadd.s32 1, %s16
    $region7: #{tpu_custom_call.1} parent=1 // loop_footer_branch
      %15 = sbr.rel target = $region3
    $region8: #{tpu_custom_call.1} parent=1 // loop_exit
      _
    %386 = vsyncpa [#allocation3], 1
    %s387 = scalar_lea.sflag [#allocation3], 1
    %388 = vsyncpa %s387, 1
    %389 = vsyncpa [#allocation6], 1
    %390 = vsyncpa [#allocation4], 1
    %s391 = scalar_lea.sflag [#allocation4], 1
    %392 = vsyncpa %s391, 1

// kernel: tpu_custom_call.1
$region0: #{tpu_custom_call.1}
  #allocation0 [shape = 'u32[]', space=smem, size = 0x4, offset = 0x4, fixed_abs, tag = 'smem constant byte address 0x4 - core index']
  #allocation1 [shape = 'u32[144,128]{1,0:T(1,128)}', space=vmem, size = 0x12000, scoped, tag = 'internal scratch']
  %s0 = inlined_call_operand.hbm [shape: f32[16,128], index: 0, kind: input, shape index: {}]
  %s1 = inlined_call_operand.hbm [shape: f32[3,128], index: 1, kind: input, shape index: {}]
  %s2 = inlined_call_operand.hbm [shape: bf16[128,128], index: 2, kind: input, shape index: {}]
  %s3 = inlined_call_operand.hbm [shape: f32[16,128], index: 3, kind: output, shape index: {}]
  %s4 = sld [smem:[#allocation0]]
  $region57: #{tpu_custom_call.1} parent=0
    _
  %s6 = ssub.s32 1, %s4
  %s7 = scalar_select 0, %s6, %s4
  $region1: #{tpu_custom_call.1} parent=0
    #allocation2 [shape = 'u8[8192]{0}', space=vmem, size = 0x2000, scoped, tag = 'input window, operand 0']
    #allocation3 [shape = 's32[2]{0}', space=sflag, size = 0x8, scoped, tag = 'scoped memory for tpu_custom_call.1']
    #allocation4 [shape = 's32[2]{0}', space=sflag, size = 0x8, scoped, tag = 'scoped memory for tpu_custom_call.1']
    #allocation5 [shape = 'u8[2048]{0}', space=vmem, size = 0x800, scoped, tag = 'input window, operand 1, single buffered']
    #allocation6 [shape = 's32[1]{0}', space=sflag, size = 0x4, scoped, tag = 'scoped memory for tpu_custom_call.1']
    #allocation7 [shape = 'u8[32768]{0}', space=vmem, size = 0x8000, scoped, tag = 'input window, operand 2, single buffered']
    #allocation8 [shape = 'u8[8192]{0}', space=vmem, size = 0x2000, scoped, tag = 'output window, operand 0']
    %8 = vsyncpa [#allocation3], 0
    %s9 = scalar_lea.sflag [#allocation3], 1
    %10 = vsyncpa %s9, 0
    %11 = vsyncpa [#allocation6], 0
    %12 = vsyncpa [#allocation4], 0
    %s13 = scalar_lea.sflag [#allocation4], 1
    %14 = vsyncpa %s13, 0
    loop: start=0, step=1, limit=4
    $region2: #{tpu_custom_call.1} parent=1 // loop_pre_header
      _
    $region3: #{tpu_custom_call.1} parent=1 // loop_header
      %s16 = sphi 0, %s20
      %p17 = scmp.ge.s32.totalorder %s16, 4
      %s26 = sphi 0, %s28
      %s29 = sphi 0, %s26
      %s30 = sphi 0, %s29
      %s46 = sphi 0, %s30
      %s50 = sphi 0, %s50
      %s52 = sphi 0, %s50
      %s53 = sphi 0, %s52
      %s67 = sphi 0, %s53
      %s71 = sphi 0, %s71
      %s73 = sphi 0, %s71
      %s74 = sphi 0, %s73
      %s88 = sphi 0, %s74
      %s94 = sphi 0, %s96
      %s97 = sphi 0, %s94
      %s98 = sphi 0, %s97
      %s114 = sphi 0, %s98
    $region4: #{tpu_custom_call.1} parent=1 // loop_header_branch
      %19 = sbr.rel (%p17) target = $region8
    $region5: #{tpu_custom_call.1} parent=1 // loop_body
      %s21 = ssub.s32 %s16, 1
      %s22 = ssub.s32 %s16, 2
      %s23 = sadd.s32 %s16, 1
      %s24 = ssub.s32 %s16, %s23
      %p25 = scmp.eq.s32.totalorder %s24, 0
      %s27 = sadd.s32 %s26, 1
      %s28 = scalar_select %p25, %s26, %s27
      %p31 = pneg %p25
      %p32 = scmp.eq.s32.totalorder %s16, 1
      %p33 = por %p31, %p32
      %p34 = scmp.ne.s32.totalorder %s26, %s29
      %p35 = scmp.eq.s32.totalorder %s16, 0
      %p36 = por %p34, %p35
      %p37 = scmp.ne.s32.totalorder %s26, %s29
      %p38 = scmp.eq.s32.totalorder %s21, 1
      %p39 = por %p37, %p38
      %p40 = scmp.ne.s32.totalorder %s29, %s30
      %p41 = scmp.eq.s32.totalorder %s21, 0
      %p42 = por %p40, %p41
      %p43 = scmp.ne.s32.totalorder %s29, %s30
      %p44 = scmp.eq.s32.totalorder %s22, 1
      %p45 = por %p43, %p44
      %p47 = scmp.ne.s32.totalorder %s30, %s46
      %p48 = scmp.eq.s32.totalorder %s22, 0
      %p49 = por %p47, %p48
      %s51 = sadd.s32 %s50, 1
      %p54 = scmp.eq.s32.totalorder %s16, 1
      %p55 = scmp.ne.s32.totalorder %s50, %s52
      %p56 = scmp.eq.s32.totalorder %s16, 0
      %p57 = por %p55, %p56
      %p58 = scmp.ne.s32.totalorder %s50, %s52
      %p59 = scmp.eq.s32.totalorder %s21, 1
      %p60 = por %p58, %p59
      %p61 = scmp.ne.s32.totalorder %s52, %s53
      %p62 = scmp.eq.s32.totalorder %s21, 0
      %p63 = por %p61, %p62
      %p64 = scmp.ne.s32.totalorder %s52, %s53
      %p65 = scmp.eq.s32.totalorder %s22, 1
      %p66 = por %p64, %p65
      %p68 = scmp.ne.s32.totalorder %s53, %s67
      %p69 = scmp.eq.s32.totalorder %s22, 0
      %p70 = por %p68, %p69
      %s72 = sadd.s32 %s71, 1
      %p75 = scmp.eq.s32.totalorder %s16, 1
      %p76 = scmp.ne.s32.totalorder %s71, %s73
      %p77 = scmp.eq.s32.totalorder %s16, 0
      %p78 = por %p76, %p77
      %p79 = scmp.ne.s32.totalorder %s71, %s73
      %p80 = scmp.eq.s32.totalorder %s21, 1
      %p81 = por %p79, %p80
      %p82 = scmp.ne.s32.totalorder %s73, %s74
      %p83 = scmp.eq.s32.totalorder %s21, 0
      %p84 = por %p82, %p83
      %p85 = scmp.ne.s32.totalorder %s73, %s74
      %p86 = scmp.eq.s32.totalorder %s22, 1
      %p87 = por %p85, %p86
      %p89 = scmp.ne.s32.totalorder %s74, %s88
      %p90 = scmp.eq.s32.totalorder %s22, 0
      %p91 = por %p89, %p90
      %s92 = ssub.s32 %s16, %s23
      %p93 = scmp.eq.s32.totalorder %s92, 0
      %s95 = sadd.s32 %s94, 1
      %s96 = scalar_select %p93, %s94, %s95
      %p99 = pneg %p93
      %p100 = scmp.eq.s32.totalorder %s16, 1
      %p101 = por %p99, %p100
      %p102 = scmp.ne.s32.totalorder %s94, %s97
      %p103 = scmp.eq.s32.totalorder %s16, 0
      %p104 = por %p102, %p103
      %p105 = scmp.ne.s32.totalorder %s94, %s97
      %p106 = scmp.eq.s32.totalorder %s21, 1
      %p107 = por %p105, %p106
      %p108 = scmp.ne.s32.totalorder %s97, %s98
      %p109 = scmp.eq.s32.totalorder %s21, 0
      %p110 = por %p108, %p109
      %p111 = scmp.ne.s32.totalorder %s97, %s98
      %p112 = scmp.eq.s32.totalorder %s22, 1
      %p113 = por %p111, %p112
      %p115 = scmp.ne.s32.totalorder %s98, %s114
      %p116 = scmp.eq.s32.totalorder %s22, 0
      %p117 = por %p115, %p116
      %p118 = scmp.le.s32.totalorder 1, %s16
      %p119 = scmp.lt.s32.totalorder %s16, 3
      %p120 = pnand %p118, %p119
      %p121 = pneg %p120
      // Predicated region
      $region9: #{tpu_custom_call.1} parent=5 // pred_check
        _
      $region10: #{tpu_custom_call.1} parent=5 // pred_check_branch
        %123 = sbr.rel (%p120) target = $region12
      $region11: #{tpu_custom_call.1} parent=5 // pred_region
        %s124 = ssub.s32 %s16, 1
        // Predicated region
        $region13: #{tpu_custom_call.1} parent=11 // pred_check
          %p125 = pneg %p63
        $region14: #{tpu_custom_call.1} parent=11 // pred_check_branch
          %127 = sbr.rel (%p125) target = $region16
        $region15: #{tpu_custom_call.1} parent=11 // pred_region
          %s129 = ssub.s32 64, 64
          %130 = vsyncadd [#allocation6], %s129
          %s132 = sshll.u32 [#allocation5], 4
          %s133 = int_to_ptr.vmem [resolvable:$true] %s132
          %135 = dma.hbm_to_vmem [thread:$0]  %s1, 64, %s133, [#allocation6]
        $region16: #{tpu_custom_call.1} parent=11 // pred_fallthru
          _
        // Predicated region
        $region17: #{tpu_custom_call.1} parent=11 // pred_check
          %p136 = pneg %p84
        $region18: #{tpu_custom_call.1} parent=11 // pred_check_branch
          %138 = sbr.rel (%p136) target = $region20
        $region19: #{tpu_custom_call.1} parent=11 // pred_region
          %s140 = ssub.s32 1024, 1024
          %141 = vsyncadd [#allocation6], %s140
          %s142 = sshll.u32 [#allocation7], 4
          %s143 = int_to_ptr.vmem [resolvable:$true] %s142
          %148 = dma.hbm_to_vmem [thread:$0]  %s2, 1024, %s143, [#allocation6], 64, 64, 4
        $region20: #{tpu_custom_call.1} parent=11 // pred_fallthru
          _
      $region12: #{tpu_custom_call.1} parent=5 // pred_fallthru
        _
      %p149 = scmp.lt.s32.totalorder %s16, 2
      // Predicated region
      $region21: #{tpu_custom_call.1} parent=5 // pred_check
        %p150 = pneg %p149
      $region22: #{tpu_custom_call.1} parent=5 // pred_check_branch
        %152 = sbr.rel (%p150) target = $region24
      $region23: #{tpu_custom_call.1} parent=5 // pred_region
        // Predicated region
        $region25: #{tpu_custom_call.1} parent=23 // pred_check
          %p153 = pneg %p36
        $region26: #{tpu_custom_call.1} parent=23 // pred_check_branch
          %155 = sbr.rel (%p153) target = $region28
        $region27: #{tpu_custom_call.1} parent=23 // pred_region
          %s156 = sand.u32 %s26, 1
          %s157 = scalar_lea.sflag [#allocation3], %s156
          %s158 = sand.u32 %s26, 1
          %s159 = smul.addr %s158, 8
          %s160 = scalar_lea.vmem [#allocation2], %s159
          %s162 = ssub.s32 128, 128
          %163 = vsyncadd %s157, %s162
          %s164 = smul.addr %s16, 128
          %s165 = scalar_lea.hbm %s0, %s164
          %s167 = sshll.u32 %s160, 4
          %s168 = int_to_ptr.vmem [resolvable:$true] %s167
          %170 = dma.hbm_to_vmem [thread:$0]  %s165, 128, %s168, %s157
        $region28: #{tpu_custom_call.1} parent=23 // pred_fallthru
          _
      $region24: #{tpu_custom_call.1} parent=5 // pred_fallthru
        _
      %p171 = scmp.le.s32.totalorder 1, %s16
      %p172 = scmp.lt.s32.totalorder %s16, 3
      %p173 = pnand %p171, %p172
      %p174 = pneg %p173
      // Predicated region
      $region29: #{tpu_custom_call.1} parent=5 // pred_check
        _
      $region30: #{tpu_custom_call.1} parent=5 // pred_check_branch
        %176 = sbr.rel (%p173) target = $region32
      $region31: #{tpu_custom_call.1} parent=5 // pred_region
        %s177 = ssub.s32 %s16, 1
        %s178 = sand.u32 %s29, 1
        %s179 = scalar_lea.sflag [#allocation3], %s178
        %s180 = sand.u32 %s29, 1
        %s181 = smul.addr %s180, 8
        %s182 = scalar_lea.vmem [#allocation2], %s181
        // Predicated region
        $region33: #{tpu_custom_call.1} parent=31 // pred_check
          %p183 = pneg %p42
        $region34: #{tpu_custom_call.1} parent=31 // pred_check_branch
          %185 = sbr.rel (%p183) target = $region36
        $region35: #{tpu_custom_call.1} parent=31 // pred_region
          %186 = dma.done %s179, 128
        $region36: #{tpu_custom_call.1} parent=31 // pred_fallthru
          _
        // Predicated region
        $region37: #{tpu_custom_call.1} parent=31 // pred_check
          %p187 = pneg %p63
        $region38: #{tpu_custom_call.1} parent=31 // pred_check_branch
          %189 = sbr.rel (%p187) target = $region40
        $region39: #{tpu_custom_call.1} parent=31 // pred_region
          %190 = dma.done [#allocation6], 64
        $region40: #{tpu_custom_call.1} parent=31 // pred_fallthru
          _
        // Predicated region
        $region41: #{tpu_custom_call.1} parent=31 // pred_check
          %p191 = pneg %p84
        $region42: #{tpu_custom_call.1} parent=31 // pred_check_branch
          %193 = sbr.rel (%p191) target = $region44
        $region43: #{tpu_custom_call.1} parent=31 // pred_region
          %194 = dma.done [#allocation6], 1024
        $region44: #{tpu_custom_call.1} parent=31 // pred_fallthru
          _
        %s195 = sand.u32 %s29, 1
        %s196 = scalar_lea.sflag [#allocation3], %s195
        %s197 = sand.u32 %s29, 1
        %s198 = smul.addr %s197, 8
        %s199 = scalar_lea.vmem [#allocation2], %s198
        %p200 = pneg %p42
        %p201 = pneg %p39
        %p202 = pneg %p63
        %p203 = pneg %p60
        %p204 = pneg %p84
        %p205 = pneg %p81
        %p206 = pneg %p110
        %p207 = pneg %p107
        %s208 = sand.u32 %s97, 1
        %s209 = scalar_lea.sflag [#allocation4], %s208
        %s210 = sand.u32 %s97, 1
        %s211 = smul.addr %s210, 8
        %s212 = scalar_lea.vmem [#allocation8], %s211
        %v214 = vld [vmem:[%s182] sm:$0xff]
        %215 = vadd.xlane.f32.xlu0 %v214
        %v216 = vpop.xlane.xlu0 %215
        %v217 = vrcp.pop 128.0
        %v218 = vmul.f32 %v216, %v217
        %v219 = vmul.f32 %v214, %v214
        %220 = vadd.xlane.f32.xlu0 %v219
        %v221 = vpop.xlane.xlu0 %220
        %v222 = vmul.f32 %v221, %v217
        %v223 = vmul.f32 %v218, %v218
        %v224 = vsub.f32 %v222, %v223
        %v225 = vmax.f32 %v224, 0.0
        %v226 = vadd.f32 %v225, 1e-05
        %v227 = vrsqrt.pop %v226
        %v228 = vld [vmem:[#allocation5] sm:$0x1]
        %v229 = vld [vmem:[#allocation5 + $0x1] sm:$0x1]
        %v230 = vld [vmem:[#allocation5 + $0x2] sm:$0x1]
        %v231 = vsub.f32 %v214, %v218
        %v232 = vmul.f32 %v231, %v227
        %v233 = vlaneseq
        %v234 = vshrl.u32 %v233, 7
        %v235 = vsub.s32 0, %v234
        %v236 = vrot.slane %v228, %v235
        %v237 = vmul.f32 %v232, %v236
        %v238 = vlaneseq
        %v239 = vshrl.u32 %v238, 7
        %v240 = vsub.s32 0, %v239
        %v241 = vrot.slane %v229, %v240
        %v242 = vadd.f32 %v237, %v241
        %v243 = vpack.c.bf16 %v242, %v242
        %v244 = vld [vmem:[#allocation7] sm:$0xf]
        %v245 = vld [vmem:[#allocation7 + $0x4] sm:$0xf]
        %v246 = vld [vmem:[#allocation7 + $0x8] sm:$0xf]
        %v247 = vld [vmem:[#allocation7 + $0xc] sm:$0xf]
        %v248 = vld [vmem:[#allocation7 + $0x10] sm:$0xf]
        %v249 = vld [vmem:[#allocation7 + $0x14] sm:$0xf]
        %v250 = vld [vmem:[#allocation7 + $0x18] sm:$0xf]
        %v251 = vld [vmem:[#allocation7 + $0x1c] sm:$0xf]
        %v252 = vld [vmem:[#allocation7 + $0x20] sm:$0xf]
        %v253 = vld [vmem:[#allocation7 + $0x24] sm:$0xf]
        %v254 = vld [vmem:[#allocation7 + $0x28] sm:$0xf]
        %v255 = vld [vmem:[#allocation7 + $0x2c] sm:$0xf]
        %v256 = vld [vmem:[#allocation7 + $0x30] sm:$0xf]
        %v257 = vld [vmem:[#allocation7 + $0x34] sm:$0xf]
        %v258 = vld [vmem:[#allocation7 + $0x38] sm:$0xf]
        %v259 = vld [vmem:[#allocation7 + $0x3c] sm:$0xf]
        %v260 = vlaneseq
        %v261 = vshrl.u32 %v260, 7
        %v262 = vsub.s32 0, %v261
        %v263 = vrot.slane %v230, %v262
        %v280 = vunpack.c.l.b16 %v244
        %v281 = vunpack.c.l.b16 %v245
        %v282 = vunpack.c.l.b16 %v246
        %v283 = vunpack.c.l.b16 %v247
        %v284 = vunpack.c.l.b16 %v248
        %v285 = vunpack.c.l.b16 %v249
        %v286 = vunpack.c.l.b16 %v250
        %v287 = vunpack.c.l.b16 %v251
        %v288 = vunpack.c.l.b16 %v252
        %v289 = vunpack.c.l.b16 %v253
        %v290 = vunpack.c.l.b16 %v254
        %v291 = vunpack.c.l.b16 %v255
        %v292 = vunpack.c.l.b16 %v256
        %v293 = vunpack.c.l.b16 %v257
        %v294 = vunpack.c.l.b16 %v258
        %v295 = vunpack.c.l.b16 %v259
        %v296 = vpack.c.b16 %v281, %v280
        %v297 = vpack.c.b16 %v283, %v282
        %v298 = vpack.c.b16 %v285, %v284
        %v299 = vpack.c.b16 %v287, %v286
        %v300 = vpack.c.b16 %v289, %v288
        %v301 = vpack.c.b16 %v291, %v290
        %v302 = vpack.c.b16 %v293, %v292
        %v303 = vpack.c.b16 %v295, %v294
        %312 = vmatprep.subr.bf16.mxu0 0
        %313 = vmatpush1.bf16.msra.mxu0 %v296
        %314 = vmatprep.subr.bf16.mxu0 0
        %315 = vmatpush1.bf16.msra.mxu0 %v297
        %316 = vmatprep.subr.bf16.mxu0 0
        %317 = vmatpush1.bf16.msra.mxu0 %v298
        %318 = vmatprep.subr.bf16.mxu0 0
        %319 = vmatpush1.bf16.msra.mxu0 %v299
        %320 = vmatprep.subr.bf16.mxu0 0
        %321 = vmatpush1.bf16.msra.mxu0 %v300
        %322 = vmatprep.subr.bf16.mxu0 0
        %323 = vmatpush1.bf16.msra.mxu0 %v301
        %324 = vmatprep.subr.bf16.mxu0 0
        %325 = vmatpush1.bf16.msra.mxu0 %v302
        %326 = vmatprep.subr.bf16.mxu0 0
        %327 = vmatpush1.bf16.msra.mxu0 %v303
        %328 = vmatprep.subr.bf16.mxu0 0
        %329 = vmatpush1.bf16.msra.mxu0 0
        %330 = vmatprep.subr.bf16.mxu0 0
        %331 = vmatpush1.bf16.msra.mxu0 0
        %332 = vmatprep.subr.bf16.mxu0 0
        %333 = vmatpush1.bf16.msra.mxu0 0
        %334 = vmatprep.subr.bf16.mxu0 0
        %335 = vmatpush1.bf16.msra.mxu0 0
        %336 = vmatprep.subr.bf16.mxu0 0
        %337 = vmatpush1.bf16.msra.mxu0 0
        %338 = vmatprep.subr.bf16.mxu0 0
        %339 = vmatpush1.bf16.msra.mxu0 0
        %340 = vmatprep.subr.bf16.mxu0 0
        %341 = vmatpush1.bf16.msra.mxu0 0
        %342 = vmatprep.subr.bf16.mxu0 0
        %343 = vmatpush1.bf16.msra.mxu0 0
        %344 = vmatprep.mubr.bf16.mxu0 0
        %345 = vmatmul.mubr.bf16.gmra.mrb[0].mxu0 %v243
        %v346 = vpop.f32.mrb[0].mxu0
        %v347 = vadd.f32 %v263, %v346
        %v348 = vpop.f32.mrb[0].mxu0
        %v349 = vpop.f32.mrb[0].mxu0
        %v350 = vpop.f32.mrb[0].mxu0
        %351 = vdwg.mxu0
        %v352 = vadd.f32 %v214, %v347
        %353 = vst [vmem:[%s212] sm:$0xff] %v352
        %s354 = sand.u32 %s97, 1
        %s355 = scalar_lea.sflag [#allocation4], %s354
        %s356 = sand.u32 %s97, 1
        %s357 = smul.addr %s356, 8
        %s358 = scalar_lea.vmem [#allocation8], %s357
        // Predicated region
        $region45: #{tpu_custom_call.1} parent=31 // pred_check
          %p359 = pneg %p107
        $region46: #{tpu_custom_call.1} parent=31 // pred_check_branch
          %361 = sbr.rel (%p359) target = $region48
        $region47: #{tpu_custom_call.1} parent=31 // pred_region
          %s363 = ssub.s32 128, 128
          %364 = vsyncadd %s355, %s363
          %s365 = smul.addr %s21, 128
          %s366 = scalar_lea.hbm %s3, %s365
          %s368 = sshll.u32 %s358, 4
          %s369 = int_to_ptr.vmem [resolvable:$true] %s368
          %371 = dma.vmem_to_hbm [thread:$0]  %s369, 128, %s366, %s355
        $region48: #{tpu_custom_call.1} parent=31 // pred_fallthru
          _
      $region32: #{tpu_custom_call.1} parent=5 // pred_fallthru
        _
      %p372 = scmp.le.s32.totalorder 2, %s16
      // Predicated region
      $region49: #{tpu_custom_call.1} parent=5 // pred_check
        %p373 = pneg %p372
      $region50: #{tpu_custom_call.1} parent=5 // pred_check_branch
        %375 = sbr.rel (%p373) target = $region52
      $region51: #{tpu_custom_call.1} parent=5 // pred_region
        %s376 = ssub.s32 %s16, 2
        // Predicated region
        $region53: #{tpu_custom_call.1} parent=51 // pred_check
          %p377 = pneg %p113
        $region54: #{tpu_custom_call.1} parent=51 // pred_check_branch
          %379 = sbr.rel (%p377) target = $region56
        $region55: #{tpu_custom_call.1} parent=51 // pred_region
          %s380 = sand.u32 %s98, 1
          %s381 = scalar_lea.sflag [#allocation4], %s380
          %s382 = sand.u32 %s98, 1
          %s383 = smul.addr %s382, 8
          %s384 = scalar_lea.vmem [#allocation8], %s383
          %385 = dma.done %s381, 128
        $region56: #{tpu_custom_call.1} parent=51 // pred_fallthru
          _
      $region52: #{tpu_custom_call.1} parent=5 // pred_fallthru
        _
    $region6: #{tpu_custom_call.1} parent=1 // loop_footer
      %s20 = sadd.s32 1, %s16
    $region7: #{tpu_custom_call.1} parent=1 // loop_footer_branch
      %15 = sbr.rel target = $region3
    $region8: #{tpu_custom_call.1} parent=1 // loop_exit
      _
    %386 = vsyncpa [#allocation3], 1
    %s387 = scalar_lea.sflag [#allocation3], 1
    %388 = vsyncpa %s387, 1
    %389 = vsyncpa [#allocation6], 1
    %390 = vsyncpa [#allocation4], 1
    %s391 = scalar_lea.sflag [#allocation4], 1
    %392 = vsyncpa %s391, 1

</llo_original>
